<compile_context>
chip_gen: v7x
topology: tpu7x:2x2x1
jax: 0.10.0
libtpu: 0.0.40
codegen_flags: <defaults>
</compile_context>

<pallas_src>
import numpy as np
import jax
import jax.numpy as jnp
from jax import lax
from jax.experimental import pallas as pl
from jax.experimental.pallas import tpu as pltpu

TAU = 0.01
INV_TAU = 1.0 / TAU          # 100.0 (exactly representable)
AB_PAD = 8                   # ab operand rows: [a, b, ones, 0, 0, 0, 0, 0]


# --------------------------------------------------------------------------
# Pallas kernel: online-softmax correspondence, transposed layout.
# Grid = (row tiles of x, key blocks of y). Per (i, k) step:
#   corr_t = y_blk @ (x_i / TAU)^T                (TN, TM)  bf16 MXU, f32 acc
#   m, alpha, p_t : online softmax state          (1, TM) / (TN, TM)
#   acc_t = alpha*acc_t + abt_blk @ p_t           (AB_PAD, TM)   (row 2 = denom)
# Last k: warped = acc_t[0:2]/acc_t[2] ; conf = m*TAU   (lane-dense stores)
# --------------------------------------------------------------------------
def _corres_kernel(x_ref, y_ref, abt_ref, w_ref, s_ref, m_sc, acc_sc, xs_sc):
    k = pl.program_id(1)

    @pl.when(k == 0)
    def _init():
        m_sc[...] = jnp.full(m_sc.shape, -jnp.inf, dtype=m_sc.dtype)
        acc_sc[...] = jnp.zeros(acc_sc.shape, dtype=acc_sc.dtype)
        # Fold 1/TAU into the x tile once per row tile (TM*C work, not TM*HW).
        xs_sc[...] = (x_ref[...] * INV_TAU).astype(jnp.bfloat16)

    y = y_ref[...]                                           # (TN, C)   bf16
    xs = xs_sc[...]                                          # (TM, C)   bf16
    # corr_t[n, m] = <y_n, x_m> / TAU   (bf16 MXU, f32 accumulation)
    corr_t = lax.dot_general(y, xs, (((1,), (1,)), ((), ())),
                             preferred_element_type=jnp.float32)  # (TN, TM)

    m_prev = m_sc[...]                                       # (1, TM)
    m_new = jnp.maximum(m_prev, jnp.max(corr_t, axis=0, keepdims=True))
    alpha = jnp.exp(m_prev - m_new)                          # (1, TM)  f32 EUP
    p_t = jnp.exp(corr_t - m_new)                            # (TN, TM) f32 EUP
    # TODO(synk): on v6e/v7x a bf16 exp path would roughly double EUP
    # throughput; kept f32 for v5e compatibility and softmax numerics.

    # acc_t[c, m] += sum_n abt[c, n] * p[n, m]; abt row 2 is ones, so
    # acc_t[2, :] is the running softmax denominator (fused into the MXU).
    acc_sc[...] = alpha * acc_sc[...] + lax.dot_general(
        abt_ref[...], p_t.astype(jnp.bfloat16),
        (((1,), (0,)), ((), ())), preferred_element_type=jnp.float32)
    m_sc[...] = m_new

    @pl.when(k == pl.num_programs(1) - 1)
    def _finish():
        acc = acc_sc[...]                                    # (AB_PAD, TM)
        inv_l = pl.reciprocal(acc[2:3, :], approx=True)      # (1, TM)
        w_ref[...] = acc[0:2, :] * inv_l                     # (2, TM) lane-dense
        s_ref[...] = m_sc[...] * TAU                         # (1, TM) lane-dense


def _pick_tile(n, preferred):
    """Largest multiple of 128 that divides n and is <= preferred; otherwise
    the largest divisor of n <= preferred (avoids the fragile hard assert)."""
    best = None
    for t in range(128, min(preferred, n) + 1, 128):
        if n % t == 0:
            best = t
    if best is not None:
        return best
    for t in range(min(preferred, n), 0, -1):
        if n % t == 0:
            return t
    return n


def correspondence_pallas(x_feat, y_feat, abt, *, tile_m=128, tile_n=512,
                          resident_bytes=8 * 1024 * 1024):
    """x_feat: (HW, C) f32, y_feat: (HW, C), abt: (AB_PAD, HW) with rows
    [a, b, 1, 0...]. Returns warped^T (2, HW) f32 and conf (1, HW) f32."""
    HW, C = x_feat.shape
    assert abt.shape == (AB_PAD, HW)

    x_f32 = x_feat.astype(jnp.float32)
    y_bf16 = y_feat.astype(jnp.bfloat16)      # halves HBM/VMEM footprint of y
    abt_bf16 = abt.astype(jnp.bfloat16)

    tm = _pick_tile(HW, tile_m)
    # Residency heuristic: keep y resident (single key block, fetched once) if
    # bf16 y fits a conservative VMEM budget (v6e/v5e strategy); otherwise
    # stream key blocks (v7x / large-frame strategy).
    if HW * C * 2 <= resident_bytes:
        tn = HW
    else:
        tn = _pick_tile(HW, tile_n)
    grid = (HW // tm, HW // tn)

    # TODO(synk): on v7x, pipeline_mode=pl.Buffered(3) on the y BlockSpec would
    # deepen the stream pipeline; omitted to keep lowering maximally portable.
    warped_t, conf = pl.pallas_call(
        _corres_kernel,
        out_shape=(jax.ShapeDtypeStruct((2, HW), jnp.float32),
                   jax.ShapeDtypeStruct((1, HW), jnp.float32)),
        grid_spec=pltpu.PrefetchScalarGridSpec(
            num_scalar_prefetch=0,
            grid=grid,
            in_specs=[pl.BlockSpec((tm, C), lambda i, k: (i, 0)),       # x rows
                      pl.BlockSpec((tn, C), lambda i, k: (k, 0)),       # y keys
                      pl.BlockSpec((AB_PAD, tn), lambda i, k: (0, k))], # ab^T
            out_specs=[pl.BlockSpec((2, tm), lambda i, k: (0, i)),
                       pl.BlockSpec((1, tm), lambda i, k: (0, i))],
            scratch_shapes=[pltpu.VMEM((1, tm), jnp.float32),       # running max
                            pltpu.VMEM((AB_PAD, tm), jnp.float32),  # acc / denom
                            pltpu.VMEM((tm, C), jnp.bfloat16)]),    # x/TAU bf16
        compiler_params=pltpu.CompilerParams(
            dimension_semantics=("parallel", "arbitrary"),
            vmem_limit_bytes=48 * 1024 * 1024),
    )(x_f32, y_bf16, abt_bf16)
    return warped_t, conf


# --------------------------------------------------------------------------
# Plain-JAX glue: backbone building blocks
# --------------------------------------------------------------------------
def conv2d(x, w, b, stride=1, padding='SAME'):
    y = lax.conv_general_dilated(x, w, (stride, stride), padding,
                                 dimension_numbers=('NCHW', 'OIHW', 'NCHW'))
    return y + b[None, :, None, None]


def reflection_pad1(x):
    return jnp.pad(x, ((0, 0), (0, 0), (1, 1), (1, 1)), mode='reflect')


def instance_norm(x, eps=1e-5):
    mean = jnp.mean(x, axis=(2, 3), keepdims=True)
    var = jnp.var(x, axis=(2, 3), keepdims=True)
    return (x - mean) * lax.rsqrt(var + eps)


def batch_norm_eval(x, g, beta, rm, rv, eps=1e-5):
    return (g[None, :, None, None] * (x - rm[None, :, None, None])
            * lax.rsqrt(rv[None, :, None, None] + eps) + beta[None, :, None, None])


def maxpool2(x):
    return lax.reduce_window(x, -jnp.inf, lax.max,
                             (1, 1, 2, 2), (1, 1, 2, 2), 'VALID')


def conv_transpose2x2(x, w, b):
    # w: (in_c, out_c, 2, 2) -- PyTorch ConvTranspose2d(k=2, s=2) layout
    n, c, h, wd = x.shape
    o = w.shape[1]
    y = jnp.einsum('nchw,coij->nohiwj', x, w).reshape(n, o, 2 * h, 2 * wd)
    return y + b[None, :, None, None]


def pad_conv_norm(p, x):
    if p['transpose']:
        y = conv_transpose2x2(x, p['w'], p['b'])
    else:
        y = conv2d(reflection_pad1(x), p['w'], p['b'],
                   stride=p['stride'], padding='VALID')
    return instance_norm(y)


def prelu(x, a):
    return jnp.where(x > 0, x, a * x)


def _cubic_w(x, A=-0.75):
    x = abs(x)
    if x <= 1.0:
        return ((A + 2.0) * x - (A + 3.0)) * x * x + 1.0
    elif x < 2.0:
        return (((x - 5.0) * x + 8.0) * x - 4.0) * A
    return 0.0


def bicubic_matrix(in_size, out_size):
    # PyTorch nn.Upsample(mode='bicubic', align_corners=True) interpolation matrix
    M = np.zeros((out_size, in_size), np.float32)
    scale = (in_size - 1) / (out_size - 1) if out_size > 1 else 0.0
    for o in range(out_size):
        src = o * scale
        i0 = int(np.floor(src))
        t = src - i0
        for k in range(-1, 3):
            idx = min(max(i0 + k, 0), in_size - 1)
            M[o, idx] += _cubic_w(k - t)
    return jnp.asarray(M)


def bicubic_upsample_x4(x):
    n, c, h, w = x.shape
    Mh = bicubic_matrix(h, 4 * h)
    Mw = bicubic_matrix(w, 4 * w)
    y = jnp.einsum('oh,nchw->ncow', Mh, x)
    y = jnp.einsum('pw,ncow->ncop', Mw, y)
    return y


# --------------------------------------------------------------------------
# VGG19-bn prefix (only the convs needed for relu2_2 / relu3_2 / relu4_2 / relu5_2)
# --------------------------------------------------------------------------
VGG_PLAN = [
    ('C', 3, 64), ('C', 64, 64), ('M',),
    ('C', 64, 128), ('C', 128, 128), ('TAP', 'relu2_2'), ('M',),
    ('C', 128, 256), ('C', 256, 256), ('TAP', 'relu3_2'),
    ('C', 256, 256), ('C', 256, 256), ('M',),
    ('C', 256, 512), ('C', 512, 512), ('TAP', 'relu4_2'),
    ('C', 512, 512), ('C', 512, 512), ('M',),
    ('C', 512, 512), ('C', 512, 512), ('TAP', 'relu5_2'),
]


def vgg_taps(params, x):
    taps = {}
    i = 0
    for item in VGG_PLAN:
        if item[0] == 'C':
            p = params['vgg'][i]; i += 1
            x = conv2d(x, p['w'], p['b'], stride=1, padding='SAME')
            x = batch_norm_eval(x, p['g'], p['beta'], p['rm'], p['rv'])
            x = jax.nn.relu(x)
        elif item[0] == 'M':
            x = maxpool2(x)
        else:
            taps[item[1]] = x
    return taps


def head(pcn_a, pcn_b, x):
    x = jax.nn.relu(pad_conv_norm(pcn_a, x))
    x = jax.nn.relu(pad_conv_norm(pcn_b, x))
    return x


def res_block(p, x):
    if p['in_c'] == p['out_c']:
        residual = x
    else:
        residual = pad_conv_norm(p['down'], x)
    out = prelu(pad_conv_norm(p['pcn1'], x), p['prelu'])
    out = pad_conv_norm(p['pcn2'], out)
    out = out + residual
    return prelu(out, p['prelu'])


def feature(params, image):
    # image: [1, 1, H, W]  ->  [HW, 256]
    x = jnp.concatenate([image, image, image], axis=1)
    taps = vgg_taps(params, x)
    r2 = head(params['h2a'], params['h2b'], taps['relu2_2'])
    r3 = head(params['h3a'], params['h3b'], taps['relu3_2'])
    r4 = head(params['h4a'], params['h4b'], taps['relu4_2'])
    r5 = head(params['h5a'], params['h5b'], taps['relu5_2'])
    feat = jnp.concatenate([r2, r3, r4, r5], axis=1)          # [1, 1024, H/4, W/4]
    feat = bicubic_upsample_x4(feat)                          # [1, 1024, H, W]
    feat = res_block(params['rb1'], feat)
    feat = res_block(params['rb2'], feat)
    feat = res_block(params['rb3'], feat)
    c = feat.shape[1]
    return feat.reshape(c, -1).T                              # [HW, C]


def correspondence_net(params, cur_frame, ref):
    h, w = ref.shape[2], ref.shape[3]
    hw = h * w
    x_feature = feature(params, cur_frame)
    y_feature = feature(params, ref[:, :1])
    x_feature = (x_feature - x_feature.mean(axis=0)) / jnp.linalg.norm(x_feature, axis=0)
    y_feature = (y_feature - y_feature.mean(axis=0)) / jnp.linalg.norm(y_feature, axis=0)

    # Augmented, already-transposed ab operand: rows [a, b, ones, zero-pad].
    # The ones-row makes the softmax denominator fall out of the warp matmul.
    ab_t = ref[0, 1:].reshape(2, -1)                          # (2, HW)
    abt = jnp.concatenate(
        [ab_t, jnp.ones((1, hw), jnp.float32),
         jnp.zeros((AB_PAD - 3, hw), jnp.float32)], axis=0)   # (AB_PAD, HW)

    warped_t, conf = correspondence_pallas(x_feature, y_feature, abt)
    W = warped_t.reshape(1, 2, h, w)                          # already (2, HW)
    S = conf.reshape(1, 1, h, w)
    return W, S


# --------------------------------------------------------------------------
# Deterministic parameter initialization (synthetic; replaces pretrained VGG)
# --------------------------------------------------------------------------
class KeyGen:
    def __init__(self, key):
        self.key = key

    def __call__(self):
        self.key, sub = jax.random.split(self.key)
        return sub


def init_conv(kg, out_c, in_c, k):
    fan_in = in_c * k * k
    w = jax.random.normal(kg(), (out_c, in_c, k, k), jnp.float32) * np.sqrt(2.0 / fan_in)
    b = jnp.zeros((out_c,), jnp.float32)
    return w, b


def init_pcn(kg, in_c, out_c, stride=1, transpose=False):
    if transpose:
        fan_in = in_c * 4
        w = jax.random.normal(kg(), (in_c, out_c, 2, 2), jnp.float32) * np.sqrt(2.0 / fan_in)
        b = jnp.zeros((out_c,), jnp.float32)
    else:
        w, b = init_conv(kg, out_c, in_c, 3)
    return dict(w=w, b=b, stride=stride, transpose=transpose)


def init_params(key):
    kg = KeyGen(key)
    vgg = []
    for item in VGG_PLAN:
        if item[0] == 'C':
            in_c, out_c = item[1], item[2]
            w, b = init_conv(kg, out_c, in_c, 3)
            vgg.append(dict(w=w, b=b,
                            g=jnp.ones((out_c,), jnp.float32),
                            beta=jnp.zeros((out_c,), jnp.float32),
                            rm=jnp.zeros((out_c,), jnp.float32),
                            rv=jnp.ones((out_c,), jnp.float32)))
    params = dict(vgg=vgg)
    params['h2a'] = init_pcn(kg, 128, 128)
    params['h2b'] = init_pcn(kg, 128, 256, stride=2)
    params['h3a'] = init_pcn(kg, 256, 128)
    params['h3b'] = init_pcn(kg, 128, 256)
    params['h4a'] = init_pcn(kg, 512, 256)
    params['h4b'] = init_pcn(kg, 256, 256, transpose=True)
    params['h5a'] = init_pcn(kg, 512, 256, transpose=True)
    params['h5b'] = init_pcn(kg, 256, 256, transpose=True)

    def init_rb(in_c, out_c):
        return dict(in_c=in_c, out_c=out_c,
                    down=init_pcn(kg, in_c, out_c),
                    pcn1=init_pcn(kg, in_c, out_c),
                    pcn2=init_pcn(kg, out_c, out_c),
                    prelu=jnp.asarray(0.25, jnp.float32))

    params['rb1'] = init_rb(256 * 4, 256)
    params['rb2'] = init_rb(256, 256)
    params['rb3'] = init_rb(256, 256)
    return params


if __name__ == "__main__":
    H = W = 16   # must be a multiple of 16 (four VGG maxpools)
    key = jax.random.PRNGKey(0)
    kp, kc, kr = jax.random.split(key, 3)
    params = init_params(kp)

    cur_frame = jax.random.uniform(kc, (1, 1, H, W), jnp.float32)
    ref = jax.random.uniform(kr, (1, 3, H, W), jnp.float32)

    fwd = jax.jit(lambda c, r: correspondence_net(params, c, r))
    Wout, Sout = fwd(cur_frame, ref)
    jax.block_until_ready((Wout, Sout))

    assert Wout.shape == (1, 2, H, W), Wout.shape
    assert Sout.shape == (1, 1, H, W), Sout.shape
    assert bool(jnp.all(jnp.isfinite(Wout))) and bool(jnp.all(jnp.isfinite(Sout)))
    print("KERNEL_OK")
</pallas_src>

<mosaic_0001>
module attributes {stable_mosaic.version = 11 : i64} {
  func.func @_corres_kernel(%arg0: i32, %arg1: i32, %arg2: memref<128x256xf32, #tpu.memory_space<vmem>>, %arg3: memref<256x256xbf16, #tpu.memory_space<vmem>>, %arg4: memref<8x256xbf16, #tpu.memory_space<vmem>>, %arg5: memref<2x128xf32, #tpu.memory_space<vmem>>, %arg6: memref<1x128xf32, #tpu.memory_space<vmem>>, %arg7: memref<1x128xf32, #tpu.memory_space<vmem>>, %arg8: memref<8x128xf32, #tpu.memory_space<vmem>>, %arg9: memref<128x256xbf16, #tpu.memory_space<vmem>>) attributes {dimension_semantics = [#tpu.dimension_semantics<parallel>, #tpu.dimension_semantics<arbitrary>], iteration_bounds = array<i64: 2, 1>, scalar_prefetch = 0 : i64, scratch_operands = 3 : i64, tpu.core_type = #tpu.core_type<tc>, window_params = [{transform_indices = @transform_0, window_bounds = array<i64: 128, 256>}, {transform_indices = @transform_1, window_bounds = array<i64: 256, 256>}, {transform_indices = @transform_2, window_bounds = array<i64: 8, 256>}, {transform_indices = @transform_3, window_bounds = array<i64: 2, 128>}, {transform_indices = @transform_4, window_bounds = array<i64: 1, 128>}]} {
    %c0_i32 = arith.constant 0 : i32
    %0 = arith.cmpi eq, %arg1, %c0_i32 : i32
    %1 = arith.extui %0 : i1 to i32
    %c0_i32_0 = arith.constant 0 : i32
    %2 = arith.cmpi ne, %1, %c0_i32_0 : i32
    scf.if %2 {
      %cst_18 = arith.constant 0xFF800000 : f32
      %27 = vector.broadcast %cst_18 : f32 to vector<1x128xf32>
      %c0_19 = arith.constant 0 : index
      %c0_20 = arith.constant 0 : index
      %28 = vector.load %arg7[%c0_19, %c0_20] : memref<1x128xf32, #tpu.memory_space<vmem>>, vector<1x128xf32>
      tpu.vector_store %arg7[%c0_19, %c0_20], %27 {strides = array<i32>} : memref<1x128xf32, #tpu.memory_space<vmem>>, vector<1x128xf32>,
      %cst_21 = arith.constant 0.000000e+00 : f32
      %29 = vector.broadcast %cst_21 : f32 to vector<8x128xf32>
      %c0_22 = arith.constant 0 : index
      %c0_23 = arith.constant 0 : index
      %30 = vector.load %arg8[%c0_22, %c0_23] : memref<8x128xf32, #tpu.memory_space<vmem>>, vector<8x128xf32>
      tpu.vector_store %arg8[%c0_22, %c0_23], %29 {strides = array<i32>} : memref<8x128xf32, #tpu.memory_space<vmem>>, vector<8x128xf32>,
      %c0_24 = arith.constant 0 : index
      %c0_25 = arith.constant 0 : index
      %31 = vector.load %arg2[%c0_24, %c0_25] : memref<128x256xf32, #tpu.memory_space<vmem>>, vector<128x256xf32>
      %cst_26 = arith.constant 1.000000e+02 : f32
      %32 = vector.broadcast %cst_26 : f32 to vector<128x256xf32>
      %33 = arith.mulf %31, %32 : vector<128x256xf32>
      %34 = arith.truncf %33 : vector<128x256xf32> to vector<128x256xbf16>
      %c0_27 = arith.constant 0 : index
      %c0_28 = arith.constant 0 : index
      %35 = vector.load %arg9[%c0_27, %c0_28] : memref<128x256xbf16, #tpu.memory_space<vmem>>, vector<128x256xbf16>
      tpu.vector_store %arg9[%c0_27, %c0_28], %34 {strides = array<i32>} : memref<128x256xbf16, #tpu.memory_space<vmem>>, vector<128x256xbf16>,
    } else {
    }
    %c0 = arith.constant 0 : index
    %c0_1 = arith.constant 0 : index
    %3 = vector.load %arg3[%c0, %c0_1] : memref<256x256xbf16, #tpu.memory_space<vmem>>, vector<256x256xbf16>
    %c0_2 = arith.constant 0 : index
    %c0_3 = arith.constant 0 : index
    %4 = vector.load %arg9[%c0_2, %c0_3] : memref<128x256xbf16, #tpu.memory_space<vmem>>, vector<128x256xbf16>
    %cst = arith.constant dense<0.000000e+00> : vector<256x128xf32>
    %5 = tpu.matmul %3, %4, %cst {dimension_numbers = #tpu.dot_dimension_numbers<[1], [1], [0], [0], [0, 0, 1, 0], [], []>} : vector<256x256xbf16>, vector<128x256xbf16>, vector<256x128xf32> -> vector<256x128xf32>
    %c0_4 = arith.constant 0 : index
    %c0_5 = arith.constant 0 : index
    %6 = vector.load %arg7[%c0_4, %c0_5] : memref<1x128xf32, #tpu.memory_space<vmem>>, vector<1x128xf32>
    %cst_6 = arith.constant dense<0xFF800000> : vector<128xf32>
    %7 = vector.multi_reduction <maximumf>, %5, %cst_6 [0] : vector<256x128xf32> to vector<128xf32>
    %8 = vector.shape_cast %7 : vector<128xf32> to vector<1x128xf32>
    %9 = arith.maximumf %6, %8 : vector<1x128xf32>
    %10 = arith.subf %6, %9 : vector<1x128xf32>
    %11 = math.exp %10 : vector<1x128xf32>
    %12 = vector.broadcast %9 : vector<1x128xf32> to vector<256x128xf32>
    %13 = arith.subf %5, %12 : vector<256x128xf32>
    %14 = math.exp %13 : vector<256x128xf32>
    %c0_7 = arith.constant 0 : index
    %c0_8 = arith.constant 0 : index
    %15 = vector.load %arg8[%c0_7, %c0_8] : memref<8x128xf32, #tpu.memory_space<vmem>>, vector<8x128xf32>
    %16 = vector.broadcast %11 : vector<1x128xf32> to vector<8x128xf32>
    %17 = arith.mulf %16, %15 : vector<8x128xf32>
    %c0_9 = arith.constant 0 : index
    %c0_10 = arith.constant 0 : index
    %18 = vector.load %arg4[%c0_9, %c0_10] : memref<8x256xbf16, #tpu.memory_space<vmem>>, vector<8x256xbf16>
    %19 = arith.truncf %14 : vector<256x128xf32> to vector<256x128xbf16>
    %cst_11 = arith.constant dense<0.000000e+00> : vector<8x128xf32>
    %20 = tpu.matmul %18, %19, %cst_11 {dimension_numbers = #tpu.dot_dimension_numbers<[1], [0], [0], [1], [0, 0, 1, 1], [], []>} : vector<8x256xbf16>, vector<256x128xbf16>, vector<8x128xf32> -> vector<8x128xf32>
    %21 = arith.addf %17, %20 : vector<8x128xf32>
    %c0_12 = arith.constant 0 : index
    %c0_13 = arith.constant 0 : index
    %22 = vector.load %arg8[%c0_12, %c0_13] : memref<8x128xf32, #tpu.memory_space<vmem>>, vector<8x128xf32>
    tpu.vector_store %arg8[%c0_12, %c0_13], %21 {strides = array<i32>} : memref<8x128xf32, #tpu.memory_space<vmem>>, vector<8x128xf32>,
    %c0_14 = arith.constant 0 : index
    %c0_15 = arith.constant 0 : index
    %23 = vector.load %arg7[%c0_14, %c0_15] : memref<1x128xf32, #tpu.memory_space<vmem>>, vector<1x128xf32>
    tpu.vector_store %arg7[%c0_14, %c0_15], %9 {strides = array<i32>} : memref<1x128xf32, #tpu.memory_space<vmem>>, vector<1x128xf32>,
    %c0_i32_16 = arith.constant 0 : i32
    %24 = arith.cmpi eq, %arg1, %c0_i32_16 : i32
    %25 = arith.extui %24 : i1 to i32
    %c0_i32_17 = arith.constant 0 : i32
    %26 = arith.cmpi ne, %25, %c0_i32_17 : i32
    scf.if %26 {
      %c0_18 = arith.constant 0 : index
      %c0_19 = arith.constant 0 : index
      %27 = vector.load %arg8[%c0_18, %c0_19] : memref<8x128xf32, #tpu.memory_space<vmem>>, vector<8x128xf32>
      %28 = vector.extract_strided_slice %27 {offsets = [2, 0], sizes = [1, 128], strides = [1, 1]} : vector<8x128xf32> to vector<1x128xf32>
      %29 = tpu.reciprocal %28 {approx = true} : vector<1x128xf32> -> vector<1x128xf32>
      %30 = vector.extract_strided_slice %27 {offsets = [0, 0], sizes = [2, 128], strides = [1, 1]} : vector<8x128xf32> to vector<2x128xf32>
      %31 = vector.broadcast %29 : vector<1x128xf32> to vector<2x128xf32>
      %32 = arith.mulf %30, %31 : vector<2x128xf32>
      %c0_20 = arith.constant 0 : index
      %c0_21 = arith.constant 0 : index
      %33 = vector.load %arg5[%c0_20, %c0_21] : memref<2x128xf32, #tpu.memory_space<vmem>>, vector<2x128xf32>
      tpu.vector_store %arg5[%c0_20, %c0_21], %32 {strides = array<i32>} : memref<2x128xf32, #tpu.memory_space<vmem>>, vector<2x128xf32>,
      %c0_22 = arith.constant 0 : index
      %c0_23 = arith.constant 0 : index
      %34 = vector.load %arg7[%c0_22, %c0_23] : memref<1x128xf32, #tpu.memory_space<vmem>>, vector<1x128xf32>
      %cst_24 = arith.constant 0.00999999977 : f32
      %35 = vector.broadcast %cst_24 : f32 to vector<1x128xf32>
      %36 = arith.mulf %34, %35 : vector<1x128xf32>
      %c0_25 = arith.constant 0 : index
      %c0_26 = arith.constant 0 : index
      %37 = vector.load %arg6[%c0_25, %c0_26] : memref<1x128xf32, #tpu.memory_space<vmem>>, vector<1x128xf32>
      tpu.vector_store %arg6[%c0_25, %c0_26], %36 {strides = array<i32>} : memref<1x128xf32, #tpu.memory_space<vmem>>, vector<1x128xf32>,
    } else {
    }
    return
  }
  func.func @transform_0(%arg0: i32, %arg1: i32) -> (i32, i32) {
    %c0_i32 = arith.constant 0 : i32
    %c0_i32_0 = arith.constant 0 : i32
    return %arg0, %c0_i32 : i32, i32
  }
  func.func @transform_1(%arg0: i32, %arg1: i32) -> (i32, i32) {
    %c0_i32 = arith.constant 0 : i32
    %c0_i32_0 = arith.constant 0 : i32
    return %arg1, %c0_i32 : i32, i32
  }
  func.func @transform_2(%arg0: i32, %arg1: i32) -> (i32, i32) {
    %c0_i32 = arith.constant 0 : i32
    %c0_i32_0 = arith.constant 0 : i32
    return %c0_i32, %arg1 : i32, i32
  }
  func.func @transform_3(%arg0: i32, %arg1: i32) -> (i32, i32) {
    %c0_i32 = arith.constant 0 : i32
    %c0_i32_0 = arith.constant 0 : i32
    return %c0_i32, %arg0 : i32, i32
  }
  func.func @transform_4(%arg0: i32, %arg1: i32) -> (i32, i32) {
    %c0_i32 = arith.constant 0 : i32
    %c0_i32_0 = arith.constant 0 : i32
    return %c0_i32, %arg0 : i32, i32
  }
}

</mosaic_0001>

<llo_original>
// kernel: squeeze.0
$region0: #{squeeze.0}
  %s0 = inlined_call_operand.vmem [shape: bf16[1,2,16,16], index: 0, kind: input, shape index: {}]
  %s1 = inlined_call_operand.vmem [shape: bf16[2,256], index: 1, kind: output, shape index: {}]
  $region1: #{squeeze.0} parent=0
    #allocation0 [shape = 'u8[8192]{0}', space=vmem, size = 0x2000, scoped, tag = 'scoped mem for output reshape']
    #allocation1 [shape = 'u8[16384]{0}', space=vmem, size = 0x4000, scoped, tag = 'scoped mem for input reshape']
    %s3 = smul.u32 4, 2
    %s4 = sshllo.u32 0, %s3
    %s5 = smul.addr 4, 3
    %s6 = scalar_lea.vmem %s0, %s5
    %s7 = sshrl.u32 %s4, 1
    %s8 = sor.u32 %s4, %s7
    %s9 = sand.u32 %s8, 85
    %s10 = sshrl.u32 %s9, 1
    %s11 = sor.u32 %s9, %s10
    %s12 = sand.u32 51, %s11
    %s13 = sshrl.u32 %s12, 2
    %s14 = sor.u32 %s12, %s13
    %s15 = sand.u32 15, %s14
    %v16 = vld [vmem:[%s6] sm:%s15]
    %v17 = vunpack.c.l.bf16 %v16
    %v18 = vunpack.c.h.bf16 %v16
    %s19 = scalar_lea.vmem [#allocation1], 24
    %20 = vst [vmem:[%s19] sm:%s4] %v17
    %s21 = smul.addr 4, 2
    %s22 = scalar_lea.vmem %s0, %s21
    %s23 = sshrl.u32 %s4, 1
    %s24 = sor.u32 %s4, %s23
    %s25 = sand.u32 %s24, 85
    %s26 = sshrl.u32 %s25, 1
    %s27 = sor.u32 %s25, %s26
    %s28 = sand.u32 51, %s27
    %s29 = sshrl.u32 %s28, 2
    %s30 = sor.u32 %s28, %s29
    %s31 = sand.u32 15, %s30
    %v32 = vld [vmem:[%s22] sm:%s31]
    %v33 = vunpack.c.l.bf16 %v32
    %v34 = vunpack.c.h.bf16 %v32
    %s35 = scalar_lea.vmem [#allocation1], 16
    %36 = vst [vmem:[%s35] sm:%s4] %v33
    %s37 = scalar_lea.vmem %s0, 4
    %s38 = sshrl.u32 %s4, 1
    %s39 = sor.u32 %s4, %s38
    %s40 = sand.u32 %s39, 85
    %s41 = sshrl.u32 %s40, 1
    %s42 = sor.u32 %s40, %s41
    %s43 = sand.u32 51, %s42
    %s44 = sshrl.u32 %s43, 2
    %s45 = sor.u32 %s43, %s44
    %s46 = sand.u32 15, %s45
    %v47 = vld [vmem:[%s37] sm:%s46]
    %v48 = vunpack.c.l.bf16 %v47
    %v49 = vunpack.c.h.bf16 %v47
    %s50 = scalar_lea.vmem [#allocation1], 8
    %51 = vst [vmem:[%s50] sm:%s4] %v48
    %s52 = sshrl.u32 %s4, 1
    %s53 = sor.u32 %s4, %s52
    %s54 = sand.u32 %s53, 85
    %s55 = sshrl.u32 %s54, 1
    %s56 = sor.u32 %s54, %s55
    %s57 = sand.u32 51, %s56
    %s58 = sshrl.u32 %s57, 2
    %s59 = sor.u32 %s57, %s58
    %s60 = sand.u32 15, %s59
    %v61 = vld [vmem:[%s0] sm:%s60]
    %v62 = vunpack.c.l.bf16 %v61
    %v63 = vunpack.c.h.bf16 %v61
    %64 = vst [vmem:[#allocation1] sm:%s4] %v62
    %v65 = vld [vmem:[#allocation1] ss:$8 sm:$0xf]
    %vm66 = vcmask 130048
    %67 = vst.msk [vmem:[#allocation0] ss:$8 sm:$0x3] %vm66, %v65
    %s68 = scalar_lea.vmem [#allocation0], 4294967281
    %69 = vst.msk [vmem:[%s68] ss:$8 sm:$0xc] %vm66, %v65
    %s70 = scalar_lea.vmem [#allocation1], 7
    %s71 = smov 3
    %v72 = vld [vmem:[%s70] ss:$16 sm:%s71]
    %s73 = scalar_lea.vmem [#allocation1], 4294967279
    %s74 = smov 12
    %v75 = vld [vmem:[%s73] ss:$16 sm:%s74]
    %vm76 = vcmask 1043458
    %v77 = vsel %vm76, %v75, %v72
    %78 = vrot.lane.b32.xlu0 %v77, 112
    %v79 = vpop.permute.xlu0 %78
    %vm80 = vcmask 1048448
    %81 = vst.msk [vmem:[#allocation0] sm:$0x3] %vm80, %v79
    %s82 = scalar_lea.vmem [#allocation0], 6
    %83 = vst.msk [vmem:[%s82] sm:$0xc] %vm80, %v79
    %s84 = scalar_lea.vmem [#allocation1], 6
    %s85 = smov 3
    %v86 = vld [vmem:[%s84] ss:$16 sm:%s85]
    %s87 = scalar_lea.vmem [#allocation1], 4294967278
    %s88 = smov 12
    %v89 = vld [vmem:[%s87] ss:$16 sm:%s88]
    %vm90 = vcmask 1043458
    %v91 = vsel %vm90, %v89, %v86
    %92 = vrot.lane.b32.xlu0 %v91, 96
    %v93 = vpop.permute.xlu0 %92
    %vm94 = vcmask 917248
    %95 = vst.msk [vmem:[#allocation0] sm:$0x3] %vm94, %v93
    %s96 = scalar_lea.vmem [#allocation0], 6
    %97 = vst.msk [vmem:[%s96] sm:$0xc] %vm94, %v93
    %s98 = scalar_lea.vmem [#allocation1], 5
    %s99 = smov 3
    %v100 = vld [vmem:[%s98] ss:$16 sm:%s99]
    %s101 = scalar_lea.vmem [#allocation1], 4294967277
    %s102 = smov 12
    %v103 = vld [vmem:[%s101] ss:$16 sm:%s102]
    %vm104 = vcmask 1043458
    %v105 = vsel %vm104, %v103, %v100
    %106 = vrot.lane.b32.xlu0 %v105, 80
    %v107 = vpop.permute.xlu0 %106
    %vm108 = vcmask 786048
    %109 = vst.msk [vmem:[#allocation0] sm:$0x3] %vm108, %v107
    %s110 = scalar_lea.vmem [#allocation0], 6
    %111 = vst.msk [vmem:[%s110] sm:$0xc] %vm108, %v107
    %s112 = scalar_lea.vmem [#allocation1], 4
    %s113 = smov 3
    %v114 = vld [vmem:[%s112] ss:$16 sm:%s113]
    %s115 = scalar_lea.vmem [#allocation1], 4294967276
    %s116 = smov 12
    %v117 = vld [vmem:[%s115] ss:$16 sm:%s116]
    %vm118 = vcmask 1043458
    %v119 = vsel %vm118, %v117, %v114
    %120 = vrot.lane.b32.xlu0 %v119, 64
    %v121 = vpop.permute.xlu0 %120
    %vm122 = vcmask 654848
    %123 = vst.msk [vmem:[#allocation0] sm:$0x3] %vm122, %v121
    %s124 = scalar_lea.vmem [#allocation0], 6
    %125 = vst.msk [vmem:[%s124] sm:$0xc] %vm122, %v121
    %s126 = scalar_lea.vmem [#allocation1], 3
    %s127 = smov 3
    %v128 = vld [vmem:[%s126] ss:$16 sm:%s127]
    %s129 = scalar_lea.vmem [#allocation1], 4294967275
    %s130 = smov 12
    %v131 = vld [vmem:[%s129] ss:$16 sm:%s130]
    %vm132 = vcmask 1043458
    %v133 = vsel %vm132, %v131, %v128
    %134 = vrot.lane.b32.xlu0 %v133, 48
    %v135 = vpop.permute.xlu0 %134
    %vm136 = vcmask 523648
    %137 = vst.msk [vmem:[#allocation0] sm:$0x3] %vm136, %v135
    %s138 = scalar_lea.vmem [#allocation0], 6
    %139 = vst.msk [vmem:[%s138] sm:$0xc] %vm136, %v135
    %s140 = scalar_lea.vmem [#allocation1], 2
    %s141 = smov 3
    %v142 = vld [vmem:[%s140] ss:$16 sm:%s141]
    %s143 = scalar_lea.vmem [#allocation1], 4294967274
    %s144 = smov 12
    %v145 = vld [vmem:[%s143] ss:$16 sm:%s144]
    %vm146 = vcmask 1043458
    %v147 = vsel %vm146, %v145, %v142
    %148 = vrot.lane.b32.xlu0 %v147, 32
    %v149 = vpop.permute.xlu0 %148
    %vm150 = vcmask 392448
    %151 = vst.msk [vmem:[#allocation0] sm:$0x3] %vm150, %v149
    %s152 = scalar_lea.vmem [#allocation0], 6
    %153 = vst.msk [vmem:[%s152] sm:$0xc] %vm150, %v149
    %s154 = scalar_lea.vmem [#allocation1], 1
    %s155 = smov 3
    %v156 = vld [vmem:[%s154] ss:$16 sm:%s155]
    %s157 = scalar_lea.vmem [#allocation1], 4294967273
    %s158 = smov 12
    %v159 = vld [vmem:[%s157] ss:$16 sm:%s158]
    %vm160 = vcmask 1043458
    %v161 = vsel %vm160, %v159, %v156
    %162 = vrot.lane.b32.xlu0 %v161, 16
    %v163 = vpop.permute.xlu0 %162
    %vm164 = vcmask 261248
    %165 = vst.msk [vmem:[#allocation0] sm:$0x3] %vm164, %v163
    %s166 = scalar_lea.vmem [#allocation0], 6
    %167 = vst.msk [vmem:[%s166] sm:$0xc] %vm164, %v163
    %s169 = smul.u32 1, 2
    %s170 = sshllo.u32 0, %s169
    %s171 = sshrl.u32 %s169, 1
    %v172 = vld [vmem:[#allocation0] sm:%s170]
    %v173 = vpack.c.bf16 0.0, %v172
    %s174 = sshllo.u32 0, %s171
    %175 = vst [vmem:[%s1] sm:%s174] %v173
    %s176 = scalar_lea.vmem [#allocation0], 8
    %v177 = vld [vmem:[%s176] sm:%s170]
    %v178 = vpack.c.bf16 0.0, %v177
    %s179 = sshllo.u32 0, %s171
    %s180 = scalar_lea.vmem %s1, 1
    %181 = vst [vmem:[%s180] sm:%s179] %v178

// kernel: _lambda_.1
$region0: #{_lambda_.1}
  #allocation0 [shape = 'u32[]', space=smem, size = 0x4, offset = 0x4, fixed_abs, tag = 'smem constant byte address 0x4 - core index']
  #allocation1 [shape = 'u32[144,128]{1,0:T(1,128)}', space=vmem, size = 0x12000, scoped, tag = 'internal scratch']
  #allocation2 [shape = 'f32[1,128]{1,0:T(1,128)}', space=vmem, size = 0x200, scoped, tag = 'scratch operand']
  #allocation3 [shape = 'f32[8,128]{1,0:T(8,128)}', space=vmem, size = 0x1000, scoped, tag = 'scratch operand']
  #allocation4 [shape = 'bf16[128,256]{1,0:T(16,128)(2,1)}', space=vmem, size = 0x10000, scoped, tag = 'scratch operand']
  %s0 = inlined_call_operand.vmem [shape: f32[256,256], index: 0, kind: input, shape index: {}]
  %s1 = inlined_call_operand.vmem [shape: bf16[256,256], index: 1, kind: input, shape index: {}]
  %s2 = inlined_call_operand.vmem [shape: bf16[8,256], index: 2, kind: input, shape index: {}]
  %s3 = inlined_call_operand.vmem [shape: f32[2,256], index: 3, kind: output, shape index: {0}]
  %s4 = inlined_call_operand.vmem [shape: f32[1,256], index: 4, kind: output, shape index: {1}]
  %5 = xla_tuple %s3, %s4
  %s6 = sld [smem:[#allocation0]]
  $region61: #{_lambda_.1} parent=0
    _
  %s8 = ssub.s32 1, %s6
  %s9 = scalar_select 0, %s8, %s6
  loop: start=0, step=1, limit=4
  $region2: #{_lambda_.1} parent=0 // loop_pre_header
    _
  $region3: #{_lambda_.1} parent=0 // loop_header
    %s11 = sphi 0, %s15
    %p12 = scmp.ge.s32.totalorder %s11, 4
    %s18 = sphi 0, %s30
    %s19 = sphi 0, %s26
    %s20 = sphi 0, %s18
    %s21 = sphi 0, %s19
    %s22 = sphi 0, %s20
    %s23 = sphi 0, %s21
    %s33 = sphi 0, %s35
    %s36 = sphi 0, %s33
    %s37 = sphi 0, %s36
    %s53 = sphi 0, %s37
    %s59 = sphi 0, %s61
    %s62 = sphi 0, %s59
    %s63 = sphi 0, %s62
    %s79 = sphi 0, %s63
    %s85 = sphi 0, %s87
    %s88 = sphi 0, %s85
    %s89 = sphi 0, %s88
    %s105 = sphi 0, %s89
    %s111 = sphi 0, %s113
    %s114 = sphi 0, %s111
    %s115 = sphi 0, %s114
    %s131 = sphi 0, %s115
    %s137 = sphi 0, %s139
    %s140 = sphi 0, %s137
    %s141 = sphi 0, %s140
    %s157 = sphi 0, %s141
  $region4: #{_lambda_.1} parent=0 // loop_header_branch
    %14 = sbr.rel (%p12) target = $region8
  $region5: #{_lambda_.1} parent=0 // loop_body
    %s16 = ssub.s32 %s11, 1
    %s17 = ssub.s32 %s11, 2
    %s24 = sadd.s32 1, %s19
    %p25 = scmp.ge.s32.totalorder %s24, 1
    %s26 = scalar_select %p25, 0, %s24
    %s27 = sadd.s32 1, %s18
    %s28 = scalar_select %p25, %s27, %s18
    %p29 = scmp.ge.s32.totalorder %s28, 2
    %s30 = scalar_select %p29, 0, %s28
    %s31 = ssub.s32 %s18, %s30
    %p32 = scmp.eq.s32.totalorder %s31, 0
    %s34 = sadd.s32 %s33, 1
    %s35 = scalar_select %p32, %s33, %s34
    %p38 = pneg %p32
    %p39 = scmp.eq.s32.totalorder %s11, 1
    %p40 = por %p38, %p39
    %p41 = scmp.ne.s32.totalorder %s33, %s36
    %p42 = scmp.eq.s32.totalorder %s11, 0
    %p43 = por %p41, %p42
    %p44 = scmp.ne.s32.totalorder %s33, %s36
    %p45 = scmp.eq.s32.totalorder %s16, 1
    %p46 = por %p44, %p45
    %p47 = scmp.ne.s32.totalorder %s36, %s37
    %p48 = scmp.eq.s32.totalorder %s16, 0
    %p49 = por %p47, %p48
    %p50 = scmp.ne.s32.totalorder %s36, %s37
    %p51 = scmp.eq.s32.totalorder %s17, 1
    %p52 = por %p50, %p51
    %p54 = scmp.ne.s32.totalorder %s37, %s53
    %p55 = scmp.eq.s32.totalorder %s17, 0
    %p56 = por %p54, %p55
    %s57 = ssub.s32 %s19, %s26
    %p58 = scmp.eq.s32.totalorder %s57, 0
    %s60 = sadd.s32 %s59, 1
    %s61 = scalar_select %p58, %s59, %s60
    %p64 = pneg %p58
    %p65 = scmp.eq.s32.totalorder %s11, 1
    %p66 = por %p64, %p65
    %p67 = scmp.ne.s32.totalorder %s59, %s62
    %p68 = scmp.eq.s32.totalorder %s11, 0
    %p69 = por %p67, %p68
    %p70 = scmp.ne.s32.totalorder %s59, %s62
    %p71 = scmp.eq.s32.totalorder %s16, 1
    %p72 = por %p70, %p71
    %p73 = scmp.ne.s32.totalorder %s62, %s63
    %p74 = scmp.eq.s32.totalorder %s16, 0
    %p75 = por %p73, %p74
    %p76 = scmp.ne.s32.totalorder %s62, %s63
    %p77 = scmp.eq.s32.totalorder %s17, 1
    %p78 = por %p76, %p77
    %p80 = scmp.ne.s32.totalorder %s63, %s79
    %p81 = scmp.eq.s32.totalorder %s17, 0
    %p82 = por %p80, %p81
    %s83 = ssub.s32 %s19, %s26
    %p84 = scmp.eq.s32.totalorder %s83, 0
    %s86 = sadd.s32 %s85, 1
    %s87 = scalar_select %p84, %s85, %s86
    %p90 = pneg %p84
    %p91 = scmp.eq.s32.totalorder %s11, 1
    %p92 = por %p90, %p91
    %p93 = scmp.ne.s32.totalorder %s85, %s88
    %p94 = scmp.eq.s32.totalorder %s11, 0
    %p95 = por %p93, %p94
    %p96 = scmp.ne.s32.totalorder %s85, %s88
    %p97 = scmp.eq.s32.totalorder %s16, 1
    %p98 = por %p96, %p97
    %p99 = scmp.ne.s32.totalorder %s88, %s89
    %p100 = scmp.eq.s32.totalorder %s16, 0
    %p101 = por %p99, %p100
    %p102 = scmp.ne.s32.totalorder %s88, %s89
    %p103 = scmp.eq.s32.totalorder %s17, 1
    %p104 = por %p102, %p103
    %p106 = scmp.ne.s32.totalorder %s89, %s105
    %p107 = scmp.eq.s32.totalorder %s17, 0
    %p108 = por %p106, %p107
    %s109 = ssub.s32 %s18, %s30
    %p110 = scmp.eq.s32.totalorder %s109, 0
    %s112 = sadd.s32 %s111, 1
    %s113 = scalar_select %p110, %s111, %s112
    %p116 = pneg %p110
    %p117 = scmp.eq.s32.totalorder %s11, 1
    %p118 = por %p116, %p117
    %p119 = scmp.ne.s32.totalorder %s111, %s114
    %p120 = scmp.eq.s32.totalorder %s11, 0
    %p121 = por %p119, %p120
    %p122 = scmp.ne.s32.totalorder %s111, %s114
    %p123 = scmp.eq.s32.totalorder %s16, 1
    %p124 = por %p122, %p123
    %p125 = scmp.ne.s32.totalorder %s114, %s115
    %p126 = scmp.eq.s32.totalorder %s16, 0
    %p127 = por %p125, %p126
    %p128 = scmp.ne.s32.totalorder %s114, %s115
    %p129 = scmp.eq.s32.totalorder %s17, 1
    %p130 = por %p128, %p129
    %p132 = scmp.ne.s32.totalorder %s115, %s131
    %p133 = scmp.eq.s32.totalorder %s17, 0
    %p134 = por %p132, %p133
    %s135 = ssub.s32 %s18, %s30
    %p136 = scmp.eq.s32.totalorder %s135, 0
    %s138 = sadd.s32 %s137, 1
    %s139 = scalar_select %p136, %s137, %s138
    %p142 = pneg %p136
    %p143 = scmp.eq.s32.totalorder %s11, 1
    %p144 = por %p142, %p143
    %p145 = scmp.ne.s32.totalorder %s137, %s140
    %p146 = scmp.eq.s32.totalorder %s11, 0
    %p147 = por %p145, %p146
    %p148 = scmp.ne.s32.totalorder %s137, %s140
    %p149 = scmp.eq.s32.totalorder %s16, 1
    %p150 = por %p148, %p149
    %p151 = scmp.ne.s32.totalorder %s140, %s141
    %p152 = scmp.eq.s32.totalorder %s16, 0
    %p153 = por %p151, %p152
    %p154 = scmp.ne.s32.totalorder %s140, %s141
    %p155 = scmp.eq.s32.totalorder %s17, 1
    %p156 = por %p154, %p155
    %p158 = scmp.ne.s32.totalorder %s141, %s157
    %p159 = scmp.eq.s32.totalorder %s17, 0
    %p160 = por %p158, %p159
    %p161 = scmp.le.s32.totalorder 1, %s11
    %p162 = scmp.lt.s32.totalorder %s11, 3
    %p163 = pnand %p161, %p162
    %p164 = pneg %p163
    // Predicated region
    $region9: #{_lambda_.1} parent=5 // pred_check
      _
    $region10: #{_lambda_.1} parent=5 // pred_check_branch
      %166 = sbr.rel (%p163) target = $region12
    $region11: #{_lambda_.1} parent=5 // pred_region
      %s167 = ssub.s32 %s11, 1
      // Predicated region
      $region13: #{_lambda_.1} parent=11 // pred_check
        %p168 = pneg %p75
      $region14: #{_lambda_.1} parent=11 // pred_check_branch
        %170 = sbr.rel (%p168) target = $region16
      $region15: #{_lambda_.1} parent=11 // pred_region
        %s171 = smul.u32 32, %s21
        %p172 = scmp.lt.s32.totalorder %s171, 31
        %s173 = scalar_select %p172, %s171, 31
        %s174 = smul.addr %s173, 2
        %s175 = smul.addr %s174, 4
        %s176 = scalar_lea.vmem %s1, %s175
        %s177 = smul.u32 32, %s21
      $region16: #{_lambda_.1} parent=11 // pred_fallthru
        _
      // Predicated region
      $region17: #{_lambda_.1} parent=11 // pred_check
        %p178 = pneg %p101
      $region18: #{_lambda_.1} parent=11 // pred_check_branch
        %180 = sbr.rel (%p178) target = $region20
      $region19: #{_lambda_.1} parent=11 // pred_region
        %s181 = smul.u32 2, %s21
        %p182 = scmp.lt.s32.totalorder %s181, 1
        %s183 = scalar_select %p182, %s181, 1
        %s184 = smul.addr %s183, 4
        %s185 = scalar_lea.vmem %s2, %s184
        %s186 = smul.u32 2, %s21
      $region20: #{_lambda_.1} parent=11 // pred_fallthru
        _
    $region12: #{_lambda_.1} parent=5 // pred_fallthru
      _
    %p187 = scmp.lt.s32.totalorder %s11, 2
    // Predicated region
    $region21: #{_lambda_.1} parent=5 // pred_check
      %p188 = pneg %p187
    $region22: #{_lambda_.1} parent=5 // pred_check_branch
      %190 = sbr.rel (%p188) target = $region24
    $region23: #{_lambda_.1} parent=5 // pred_region
      // Predicated region
      $region25: #{_lambda_.1} parent=23 // pred_check
        %p191 = pneg %p43
      $region26: #{_lambda_.1} parent=23 // pred_check_branch
        %193 = sbr.rel (%p191) target = $region28
      $region27: #{_lambda_.1} parent=23 // pred_region
        %s194 = smul.u32 16, %s18
        %p195 = scmp.lt.s32.totalorder %s194, 31
        %s196 = scalar_select %p195, %s194, 31
        %s197 = smul.addr %s196, 2
        %s198 = smul.addr %s197, 8
        %s199 = scalar_lea.vmem %s0, %s198
        %s200 = smul.u32 16, %s18
      $region28: #{_lambda_.1} parent=23 // pred_fallthru
        _
    $region24: #{_lambda_.1} parent=5 // pred_fallthru
      _
    %p201 = scmp.le.s32.totalorder 1, %s11
    %p202 = scmp.lt.s32.totalorder %s11, 3
    %p203 = pnand %p201, %p202
    %p204 = pneg %p203
    // Predicated region
    $region29: #{_lambda_.1} parent=5 // pred_check
      _
    $region30: #{_lambda_.1} parent=5 // pred_check_branch
      %206 = sbr.rel (%p203) target = $region32
    $region31: #{_lambda_.1} parent=5 // pred_region
      %s207 = ssub.s32 %s11, 1
      %s208 = smul.u32 16, %s20
      %p209 = scmp.lt.s32.totalorder %s208, 31
      %s210 = scalar_select %p209, %s208, 31
      %s211 = smul.addr %s210, 2
      %s212 = smul.addr %s211, 8
      %s213 = scalar_lea.vmem %s0, %s212
      %p214 = pneg %p49
      %p215 = pneg %p46
      %s216 = smul.u32 32, %s21
      %p217 = scmp.lt.s32.totalorder %s216, 31
      %s218 = scalar_select %p217, %s216, 31
      %s219 = smul.addr %s218, 2
      %s220 = smul.addr %s219, 4
      %s221 = scalar_lea.vmem %s1, %s220
      %p222 = pneg %p75
      %p223 = pneg %p72
      %s224 = smul.u32 2, %s21
      %p225 = scmp.lt.s32.totalorder %s224, 1
      %s226 = scalar_select %p225, %s224, 1
      %s227 = smul.addr %s226, 4
      %s228 = scalar_lea.vmem %s2, %s227
      %p229 = pneg %p101
      %p230 = pneg %p98
      %p231 = pneg %p127
      %p232 = pneg %p124
      %p233 = scmp.lt.s32.totalorder %s20, 1
      %s234 = scalar_select %p233, %s20, 1
      %s235 = smul.addr %s234, 2
      %s236 = scalar_lea.vmem %s3, %s235
      %p237 = pneg %p153
      %p238 = pneg %p150
      %p239 = scmp.lt.s32.totalorder %s20, 1
      %s240 = scalar_select %p239, %s20, 1
      %s241 = scalar_lea.vmem %s4, %s240
      %s242 = smul.u32 16, %s20
      %p243 = scmp.lt.s32.totalorder %s242, 31
      %s244 = scalar_select %p243, %s242, 31
      %s245 = smul.addr %s244, 2
      %s246 = smul.addr %s245, 8
      %s247 = scalar_lea.vmem %s0, %s246
      %s248 = smul.u32 16, %s20
      %s249 = smul.u32 32, %s21
      %p250 = scmp.lt.s32.totalorder %s249, 31
      %s251 = scalar_select %p250, %s249, 31
      %s252 = smul.addr %s251, 2
      %s253 = smul.addr %s252, 4
      %s254 = scalar_lea.vmem %s1, %s253
      %s255 = smul.u32 32, %s21
      %s256 = smul.u32 2, %s21
      %p257 = scmp.lt.s32.totalorder %s256, 1
      %s258 = scalar_select %p257, %s256, 1
      %s259 = smul.addr %s258, 4
      %s260 = scalar_lea.vmem %s2, %s259
      %s261 = smul.u32 2, %s21
      %p262 = scmp.lt.s32.totalorder %s20, 1
      %s263 = scalar_select %p262, %s20, 1
      %s264 = smul.addr %s263, 2
      %s265 = scalar_lea.vmem %s3, %s264
      %p266 = scmp.lt.s32.totalorder %s20, 1
      %s267 = scalar_select %p266, %s20, 1
      %s268 = scalar_lea.vmem %s4, %s267
      %p270 = scmp.eq.s32.totalorder %s21, 0
      // Predicated region
      $region33: #{_lambda_.1} parent=31 // pred_check
        %p271 = pneg %p270
      $region34: #{_lambda_.1} parent=31 // pred_check_branch
        %273 = sbr.rel (%p271) target = $region36
      $region35: #{_lambda_.1} parent=31 // pred_region
        %274 = vst [vmem:[#allocation2] sm:$0x1] -inf
        %275 = vst [vmem:[#allocation3] sm:$0xff] 0.0
        %v276 = vld [vmem:[%s247] sm:$0xff]
        %v277 = vld [vmem:[%s247 + $0x8] sm:$0xff]
        %v278 = vld [vmem:[%s247 + $0x10] sm:$0xff]
        %v279 = vld [vmem:[%s247 + $0x18] sm:$0xff]
        %v280 = vld [vmem:[%s247 + $0x20] sm:$0xff]
        %v281 = vld [vmem:[%s247 + $0x28] sm:$0xff]
        %v282 = vld [vmem:[%s247 + $0x30] sm:$0xff]
        %v283 = vld [vmem:[%s247 + $0x38] sm:$0xff]
        %v284 = vld [vmem:[%s247 + $0x40] sm:$0xff]
        %v285 = vld [vmem:[%s247 + $0x48] sm:$0xff]
        %v286 = vld [vmem:[%s247 + $0x50] sm:$0xff]
        %v287 = vld [vmem:[%s247 + $0x58] sm:$0xff]
        %v288 = vld [vmem:[%s247 + $0x60] sm:$0xff]
        %v289 = vld [vmem:[%s247 + $0x68] sm:$0xff]
        %v290 = vld [vmem:[%s247 + $0x70] sm:$0xff]
        %v291 = vld [vmem:[%s247 + $0x78] sm:$0xff]
        %v292 = vld [vmem:[%s247 + $0x80] sm:$0xff]
        %v293 = vld [vmem:[%s247 + $0x88] sm:$0xff]
        %v294 = vld [vmem:[%s247 + $0x90] sm:$0xff]
        %v295 = vld [vmem:[%s247 + $0x98] sm:$0xff]
        %v296 = vld [vmem:[%s247 + $0xa0] sm:$0xff]
        %v297 = vld [vmem:[%s247 + $0xa8] sm:$0xff]
        %v298 = vld [vmem:[%s247 + $0xb0] sm:$0xff]
        %v299 = vld [vmem:[%s247 + $0xb8] sm:$0xff]
        %v300 = vld [vmem:[%s247 + $0xc0] sm:$0xff]
        %v301 = vld [vmem:[%s247 + $0xc8] sm:$0xff]
        %v302 = vld [vmem:[%s247 + $0xd0] sm:$0xff]
        %v303 = vld [vmem:[%s247 + $0xd8] sm:$0xff]
        %v304 = vld [vmem:[%s247 + $0xe0] sm:$0xff]
        %v305 = vld [vmem:[%s247 + $0xe8] sm:$0xff]
        %v306 = vld [vmem:[%s247 + $0xf0] sm:$0xff]
        %v307 = vld [vmem:[%s247 + $0xf8] sm:$0xff]
        %v308 = vmul.f32 %v276, 100.0
        %v309 = vmul.f32 %v277, 100.0
        %v310 = vmul.f32 %v278, 100.0
        %v311 = vmul.f32 %v279, 100.0
        %v312 = vmul.f32 %v280, 100.0
        %v313 = vmul.f32 %v281, 100.0
        %v314 = vmul.f32 %v282, 100.0
        %v315 = vmul.f32 %v283, 100.0
        %v316 = vmul.f32 %v284, 100.0
        %v317 = vmul.f32 %v285, 100.0
        %v318 = vmul.f32 %v286, 100.0
        %v319 = vmul.f32 %v287, 100.0
        %v320 = vmul.f32 %v288, 100.0
        %v321 = vmul.f32 %v289, 100.0
        %v322 = vmul.f32 %v290, 100.0
        %v323 = vmul.f32 %v291, 100.0
        %v324 = vmul.f32 %v292, 100.0
        %v325 = vmul.f32 %v293, 100.0
        %v326 = vmul.f32 %v294, 100.0
        %v327 = vmul.f32 %v295, 100.0
        %v328 = vmul.f32 %v296, 100.0
        %v329 = vmul.f32 %v297, 100.0
        %v330 = vmul.f32 %v298, 100.0
        %v331 = vmul.f32 %v299, 100.0
        %v332 = vmul.f32 %v300, 100.0
        %v333 = vmul.f32 %v301, 100.0
        %v334 = vmul.f32 %v302, 100.0
        %v335 = vmul.f32 %v303, 100.0
        %v336 = vmul.f32 %v304, 100.0
        %v337 = vmul.f32 %v305, 100.0
        %v338 = vmul.f32 %v306, 100.0
        %v339 = vmul.f32 %v307, 100.0
        %v340 = vpack.c.bf16 %v310, %v308
        %v341 = vpack.c.bf16 %v311, %v309
        %v342 = vpack.c.bf16 %v314, %v312
        %v343 = vpack.c.bf16 %v315, %v313
        %v344 = vpack.c.bf16 %v318, %v316
        %v345 = vpack.c.bf16 %v319, %v317
        %v346 = vpack.c.bf16 %v322, %v320
        %v347 = vpack.c.bf16 %v323, %v321
        %v348 = vpack.c.bf16 %v326, %v324
        %v349 = vpack.c.bf16 %v327, %v325
        %v350 = vpack.c.bf16 %v330, %v328
        %v351 = vpack.c.bf16 %v331, %v329
        %v352 = vpack.c.bf16 %v334, %v332
        %v353 = vpack.c.bf16 %v335, %v333
        %v354 = vpack.c.bf16 %v338, %v336
        %v355 = vpack.c.bf16 %v339, %v337
        %356 = vst [vmem:[#allocation4] sm:$0xff] %v340
        %357 = vst [vmem:[#allocation4 + $0x8] sm:$0xff] %v341
        %358 = vst [vmem:[#allocation4 + $0x10] sm:$0xff] %v342
        %359 = vst [vmem:[#allocation4 + $0x18] sm:$0xff] %v343
        %360 = vst [vmem:[#allocation4 + $0x20] sm:$0xff] %v344
        %361 = vst [vmem:[#allocation4 + $0x28] sm:$0xff] %v345
        %362 = vst [vmem:[#allocation4 + $0x30] sm:$0xff] %v346
        %363 = vst [vmem:[#allocation4 + $0x38] sm:$0xff] %v347
        %364 = vst [vmem:[#allocation4 + $0x40] sm:$0xff] %v348
        %365 = vst [vmem:[#allocation4 + $0x48] sm:$0xff] %v349
        %366 = vst [vmem:[#allocation4 + $0x50] sm:$0xff] %v350
        %367 = vst [vmem:[#allocation4 + $0x58] sm:$0xff] %v351
        %368 = vst [vmem:[#allocation4 + $0x60] sm:$0xff] %v352
        %369 = vst [vmem:[#allocation4 + $0x68] sm:$0xff] %v353
        %370 = vst [vmem:[#allocation4 + $0x70] sm:$0xff] %v354
        %371 = vst [vmem:[#allocation4 + $0x78] sm:$0xff] %v355
      $region36: #{_lambda_.1} parent=31 // pred_fallthru
        _
      %v372 = vld [vmem:[%s254] sm:$0xff]
      %v373 = vld [vmem:[%s254 + $0x8] sm:$0xff]
      %v374 = vld [vmem:[%s254 + $0x10] sm:$0xff]
      %v375 = vld [vmem:[%s254 + $0x18] sm:$0xff]
      %v376 = vld [vmem:[%s254 + $0x20] sm:$0xff]
      %v377 = vld [vmem:[%s254 + $0x28] sm:$0xff]
      %v378 = vld [vmem:[%s254 + $0x30] sm:$0xff]
      %v379 = vld [vmem:[%s254 + $0x38] sm:$0xff]
      %v380 = vld [vmem:[%s254 + $0x40] sm:$0xff]
      %v381 = vld [vmem:[%s254 + $0x48] sm:$0xff]
      %v382 = vld [vmem:[%s254 + $0x50] sm:$0xff]
      %v383 = vld [vmem:[%s254 + $0x58] sm:$0xff]
      %v384 = vld [vmem:[%s254 + $0x60] sm:$0xff]
      %v385 = vld [vmem:[%s254 + $0x68] sm:$0xff]
      %v386 = vld [vmem:[%s254 + $0x70] sm:$0xff]
      %v387 = vld [vmem:[%s254 + $0x78] sm:$0xff]
      %v388 = vld [vmem:[%s254 + $0x80] sm:$0xff]
      %v389 = vld [vmem:[%s254 + $0x88] sm:$0xff]
      %v390 = vld [vmem:[%s254 + $0x90] sm:$0xff]
      %v391 = vld [vmem:[%s254 + $0x98] sm:$0xff]
      %v392 = vld [vmem:[%s254 + $0xa0] sm:$0xff]
      %v393 = vld [vmem:[%s254 + $0xa8] sm:$0xff]
      %v394 = vld [vmem:[%s254 + $0xb0] sm:$0xff]
      %v395 = vld [vmem:[%s254 + $0xb8] sm:$0xff]
      %v396 = vld [vmem:[%s254 + $0xc0] sm:$0xff]
      %v397 = vld [vmem:[%s254 + $0xc8] sm:$0xff]
      %v398 = vld [vmem:[%s254 + $0xd0] sm:$0xff]
      %v399 = vld [vmem:[%s254 + $0xd8] sm:$0xff]
      %v400 = vld [vmem:[%s254 + $0xe0] sm:$0xff]
      %v401 = vld [vmem:[%s254 + $0xe8] sm:$0xff]
      %v402 = vld [vmem:[%s254 + $0xf0] sm:$0xff]
      %v403 = vld [vmem:[%s254 + $0xf8] sm:$0xff]
      %v404 = vld [vmem:[#allocation4] sm:$0xff]
      %v405 = vld [vmem:[#allocation4 + $0x8] sm:$0xff]
      %v406 = vld [vmem:[#allocation4 + $0x10] sm:$0xff]
      %v407 = vld [vmem:[#allocation4 + $0x18] sm:$0xff]
      %v408 = vld [vmem:[#allocation4 + $0x20] sm:$0xff]
      %v409 = vld [vmem:[#allocation4 + $0x28] sm:$0xff]
      %v410 = vld [vmem:[#allocation4 + $0x30] sm:$0xff]
      %v411 = vld [vmem:[#allocation4 + $0x38] sm:$0xff]
      %v412 = vld [vmem:[#allocation4 + $0x40] sm:$0xff]
      %v413 = vld [vmem:[#allocation4 + $0x48] sm:$0xff]
      %v414 = vld [vmem:[#allocation4 + $0x50] sm:$0xff]
      %v415 = vld [vmem:[#allocation4 + $0x58] sm:$0xff]
      %v416 = vld [vmem:[#allocation4 + $0x60] sm:$0xff]
      %v417 = vld [vmem:[#allocation4 + $0x68] sm:$0xff]
      %v418 = vld [vmem:[#allocation4 + $0x70] sm:$0xff]
      %v419 = vld [vmem:[#allocation4 + $0x78] sm:$0xff]
      %v452 = vunpack.c.l.b16 %v372
      %v453 = vunpack.c.h.b16 %v372
      %v454 = vunpack.c.l.b16 %v373
      %v455 = vunpack.c.h.b16 %v373
      %v456 = vunpack.c.l.b16 %v374
      %v457 = vunpack.c.h.b16 %v374
      %v458 = vunpack.c.l.b16 %v375
      %v459 = vunpack.c.h.b16 %v375
      %v460 = vunpack.c.l.b16 %v376
      %v461 = vunpack.c.h.b16 %v376
      %v462 = vunpack.c.l.b16 %v377
      %v463 = vunpack.c.h.b16 %v377
      %v464 = vunpack.c.l.b16 %v378
      %v465 = vunpack.c.h.b16 %v378
      %v466 = vunpack.c.l.b16 %v379
      %v467 = vunpack.c.h.b16 %v379
      %v468 = vunpack.c.l.b16 %v380
      %v469 = vunpack.c.h.b16 %v380
      %v470 = vunpack.c.l.b16 %v381
      %v471 = vunpack.c.h.b16 %v381
      %v472 = vunpack.c.l.b16 %v382
      %v473 = vunpack.c.h.b16 %v382
      %v474 = vunpack.c.l.b16 %v383
      %v475 = vunpack.c.h.b16 %v383
      %v476 = vunpack.c.l.b16 %v384
      %v477 = vunpack.c.h.b16 %v384
      %v478 = vunpack.c.l.b16 %v385
      %v479 = vunpack.c.h.b16 %v385
      %v480 = vunpack.c.l.b16 %v386
      %v481 = vunpack.c.h.b16 %v386
      %v482 = vunpack.c.l.b16 %v387
      %v483 = vunpack.c.h.b16 %v387
      %v484 = vunpack.c.l.b16 %v388
      %v485 = vunpack.c.h.b16 %v388
      %v486 = vunpack.c.l.b16 %v389
      %v487 = vunpack.c.h.b16 %v389
      %v488 = vunpack.c.l.b16 %v390
      %v489 = vunpack.c.h.b16 %v390
      %v490 = vunpack.c.l.b16 %v391
      %v491 = vunpack.c.h.b16 %v391
      %v492 = vunpack.c.l.b16 %v392
      %v493 = vunpack.c.h.b16 %v392
      %v494 = vunpack.c.l.b16 %v393
      %v495 = vunpack.c.h.b16 %v393
      %v496 = vunpack.c.l.b16 %v394
      %v497 = vunpack.c.h.b16 %v394
      %v498 = vunpack.c.l.b16 %v395
      %v499 = vunpack.c.h.b16 %v395
      %v500 = vunpack.c.l.b16 %v396
      %v501 = vunpack.c.h.b16 %v396
      %v502 = vunpack.c.l.b16 %v397
      %v503 = vunpack.c.h.b16 %v397
      %v504 = vunpack.c.l.b16 %v398
      %v505 = vunpack.c.h.b16 %v398
      %v506 = vunpack.c.l.b16 %v399
      %v507 = vunpack.c.h.b16 %v399
      %v508 = vunpack.c.l.b16 %v400
      %v509 = vunpack.c.h.b16 %v400
      %v510 = vunpack.c.l.b16 %v401
      %v511 = vunpack.c.h.b16 %v401
      %v512 = vunpack.c.l.b16 %v402
      %v513 = vunpack.c.h.b16 %v402
      %v514 = vunpack.c.l.b16 %v403
      %v515 = vunpack.c.h.b16 %v403
      %v516 = vpack.c.b16 %v454, %v452
      %v517 = vpack.c.b16 %v455, %v453
      %v518 = vpack.c.b16 %v458, %v456
      %v519 = vpack.c.b16 %v459, %v457
      %v520 = vpack.c.b16 %v462, %v460
      %v521 = vpack.c.b16 %v463, %v461
      %v522 = vpack.c.b16 %v466, %v464
      %v523 = vpack.c.b16 %v467, %v465
      %v524 = vpack.c.b16 %v470, %v468
      %v525 = vpack.c.b16 %v471, %v469
      %v526 = vpack.c.b16 %v474, %v472
      %v527 = vpack.c.b16 %v475, %v473
      %v528 = vpack.c.b16 %v478, %v476
      %v529 = vpack.c.b16 %v479, %v477
      %v530 = vpack.c.b16 %v482, %v480
      %v531 = vpack.c.b16 %v483, %v481
      %v532 = vpack.c.b16 %v486, %v484
      %v533 = vpack.c.b16 %v487, %v485
      %v534 = vpack.c.b16 %v490, %v488
      %v535 = vpack.c.b16 %v491, %v489
      %v536 = vpack.c.b16 %v494, %v492
      %v537 = vpack.c.b16 %v495, %v493
      %v538 = vpack.c.b16 %v498, %v496
      %v539 = vpack.c.b16 %v499, %v497
      %v540 = vpack.c.b16 %v502, %v500
      %v541 = vpack.c.b16 %v503, %v501
      %v542 = vpack.c.b16 %v506, %v504
      %v543 = vpack.c.b16 %v507, %v505
      %v544 = vpack.c.b16 %v510, %v508
      %v545 = vpack.c.b16 %v511, %v509
      %v546 = vpack.c.b16 %v514, %v512
      %v547 = vpack.c.b16 %v515, %v513
      %580 = vmatprep.subr.bf16.mxu0 %v405
      %581 = vmatpush1.bf16.xpose.msra.mxu0 %v404
      %582 = vmatprep.subr.bf16.mxu0 %v407
      %583 = vmatpush1.bf16.xpose.msra.mxu0 %v406
      %584 = vmatprep.subr.bf16.mxu0 %v409
      %585 = vmatpush1.bf16.xpose.msra.mxu0 %v408
      %586 = vmatprep.subr.bf16.mxu0 %v411
      %587 = vmatpush1.bf16.xpose.msra.mxu0 %v410
      %588 = vmatprep.subr.bf16.mxu0 %v413
      %589 = vmatpush1.bf16.xpose.msra.mxu0 %v412
      %590 = vmatprep.subr.bf16.mxu0 %v415
      %591 = vmatpush1.bf16.xpose.msra.mxu0 %v414
      %592 = vmatprep.subr.bf16.mxu0 %v417
      %593 = vmatpush1.bf16.xpose.msra.mxu0 %v416
      %594 = vmatprep.subr.bf16.mxu0 %v419
      %595 = vmatpush1.bf16.xpose.msra.mxu0 %v418
      %596 = vmatprep.subr.bf16.mxu0 0
      %597 = vmatpush1.bf16.xpose.msra.mxu0 0
      %598 = vmatprep.subr.bf16.mxu0 0
      %599 = vmatpush1.bf16.xpose.msra.mxu0 0
      %600 = vmatprep.subr.bf16.mxu0 0
      %601 = vmatpush1.bf16.xpose.msra.mxu0 0
      %602 = vmatprep.subr.bf16.mxu0 0
      %603 = vmatpush1.bf16.xpose.msra.mxu0 0
      %604 = vmatprep.subr.bf16.mxu0 0
      %605 = vmatpush1.bf16.xpose.msra.mxu0 0
      %606 = vmatprep.subr.bf16.mxu0 0
      %607 = vmatpush1.bf16.xpose.msra.mxu0 0
      %608 = vmatprep.subr.bf16.mxu0 0
      %609 = vmatpush1.bf16.xpose.msra.mxu0 0
      %610 = vmatprep.subr.bf16.mxu0 0
      %611 = vmatpush1.bf16.xpose.msra.mxu0 0
      %612 = vmatprep.mubr.bf16.mxu0 %v517
      %613 = vmatmul.mubr.bf16.gmra.mrb[0].mxu0 %v516
      %v614 = vpop.f32.mrb[0].mxu0
      %v615 = vadd.f32 0.0, %v614
      %v616 = vpop.f32.mrb[0].mxu0
      %v617 = vpop.f32.mrb[0].mxu0
      %v618 = vadd.f32 0.0, %v617
      %v619 = vpop.f32.mrb[0].mxu0
      %620 = vmatprep.mubr.bf16.mxu0 %v519
      %621 = vmatmul.mubr.bf16.gmra.mrb[0].mxu0 %v518
      %v622 = vpop.f32.mrb[0].mxu0
      %v623 = vadd.f32 0.0, %v622
      %v624 = vpop.f32.mrb[0].mxu0
      %v625 = vpop.f32.mrb[0].mxu0
      %v626 = vadd.f32 0.0, %v625
      %v627 = vpop.f32.mrb[0].mxu0
      %628 = vmatprep.mubr.bf16.mxu0 %v521
      %629 = vmatmul.mubr.bf16.gmra.mrb[0].mxu0 %v520
      %v630 = vpop.f32.mrb[0].mxu0
      %v631 = vadd.f32 0.0, %v630
      %v632 = vpop.f32.mrb[0].mxu0
      %v633 = vpop.f32.mrb[0].mxu0
      %v634 = vadd.f32 0.0, %v633
      %v635 = vpop.f32.mrb[0].mxu0
      %636 = vmatprep.mubr.bf16.mxu0 %v523
      %637 = vmatmul.mubr.bf16.gmra.mrb[0].mxu0 %v522
      %v638 = vpop.f32.mrb[0].mxu0
      %v639 = vadd.f32 0.0, %v638
      %v640 = vpop.f32.mrb[0].mxu0
      %v641 = vpop.f32.mrb[0].mxu0
      %v642 = vadd.f32 0.0, %v641
      %v643 = vpop.f32.mrb[0].mxu0
      %644 = vmatprep.mubr.bf16.mxu0 %v525
      %645 = vmatmul.mubr.bf16.gmra.mrb[0].mxu0 %v524
      %v646 = vpop.f32.mrb[0].mxu0
      %v647 = vadd.f32 0.0, %v646
      %v648 = vpop.f32.mrb[0].mxu0
      %v649 = vpop.f32.mrb[0].mxu0
      %v650 = vadd.f32 0.0, %v649
      %v651 = vpop.f32.mrb[0].mxu0
      %652 = vmatprep.mubr.bf16.mxu0 %v527
      %653 = vmatmul.mubr.bf16.gmra.mrb[0].mxu0 %v526
      %v654 = vpop.f32.mrb[0].mxu0
      %v655 = vadd.f32 0.0, %v654
      %v656 = vpop.f32.mrb[0].mxu0
      %v657 = vpop.f32.mrb[0].mxu0
      %v658 = vadd.f32 0.0, %v657
      %v659 = vpop.f32.mrb[0].mxu0
      %660 = vmatprep.mubr.bf16.mxu0 %v529
      %661 = vmatmul.mubr.bf16.gmra.mrb[0].mxu0 %v528
      %v662 = vpop.f32.mrb[0].mxu0
      %v663 = vadd.f32 0.0, %v662
      %v664 = vpop.f32.mrb[0].mxu0
      %v665 = vpop.f32.mrb[0].mxu0
      %v666 = vadd.f32 0.0, %v665
      %v667 = vpop.f32.mrb[0].mxu0
      %668 = vmatprep.mubr.bf16.mxu0 %v531
      %669 = vmatmul.mubr.bf16.gmra.mrb[0].mxu0 %v530
      %v670 = vpop.f32.mrb[0].mxu0
      %v671 = vadd.f32 0.0, %v670
      %v672 = vpop.f32.mrb[0].mxu0
      %v673 = vpop.f32.mrb[0].mxu0
      %v674 = vadd.f32 0.0, %v673
      %v675 = vpop.f32.mrb[0].mxu0
      %676 = vmatprep.mubr.bf16.mxu0 %v533
      %677 = vmatmul.mubr.bf16.gmra.mrb[0].mxu0 %v532
      %v678 = vpop.f32.mrb[0].mxu0
      %v679 = vadd.f32 0.0, %v678
      %v680 = vpop.f32.mrb[0].mxu0
      %v681 = vpop.f32.mrb[0].mxu0
      %v682 = vadd.f32 0.0, %v681
      %v683 = vpop.f32.mrb[0].mxu0
      %684 = vmatprep.mubr.bf16.mxu0 %v535
      %685 = vmatmul.mubr.bf16.gmra.mrb[0].mxu0 %v534
      %v686 = vpop.f32.mrb[0].mxu0
      %v687 = vadd.f32 0.0, %v686
      %v688 = vpop.f32.mrb[0].mxu0
      %v689 = vpop.f32.mrb[0].mxu0
      %v690 = vadd.f32 0.0, %v689
      %v691 = vpop.f32.mrb[0].mxu0
      %692 = vmatprep.mubr.bf16.mxu0 %v537
      %693 = vmatmul.mubr.bf16.gmra.mrb[0].mxu0 %v536
      %v694 = vpop.f32.mrb[0].mxu0
      %v695 = vadd.f32 0.0, %v694
      %v696 = vpop.f32.mrb[0].mxu0
      %v697 = vpop.f32.mrb[0].mxu0
      %v698 = vadd.f32 0.0, %v697
      %v699 = vpop.f32.mrb[0].mxu0
      %700 = vmatprep.mubr.bf16.mxu0 %v539
      %701 = vmatmul.mubr.bf16.gmra.mrb[0].mxu0 %v538
      %v702 = vpop.f32.mrb[0].mxu0
      %v703 = vadd.f32 0.0, %v702
      %v704 = vpop.f32.mrb[0].mxu0
      %v705 = vpop.f32.mrb[0].mxu0
      %v706 = vadd.f32 0.0, %v705
      %v707 = vpop.f32.mrb[0].mxu0
      %708 = vmatprep.mubr.bf16.mxu0 %v541
      %709 = vmatmul.mubr.bf16.gmra.mrb[0].mxu0 %v540
      %v710 = vpop.f32.mrb[0].mxu0
      %v711 = vadd.f32 0.0, %v710
      %v712 = vpop.f32.mrb[0].mxu0
      %v713 = vpop.f32.mrb[0].mxu0
      %v714 = vadd.f32 0.0, %v713
      %v715 = vpop.f32.mrb[0].mxu0
      %716 = vmatprep.mubr.bf16.mxu0 %v543
      %717 = vmatmul.mubr.bf16.gmra.mrb[0].mxu0 %v542
      %v718 = vpop.f32.mrb[0].mxu0
      %v719 = vadd.f32 0.0, %v718
      %v720 = vpop.f32.mrb[0].mxu0
      %v721 = vpop.f32.mrb[0].mxu0
      %v722 = vadd.f32 0.0, %v721
      %v723 = vpop.f32.mrb[0].mxu0
      %724 = vmatprep.mubr.bf16.mxu0 %v545
      %725 = vmatmul.mubr.bf16.gmra.mrb[0].mxu0 %v544
      %v726 = vpop.f32.mrb[0].mxu0
      %v727 = vadd.f32 0.0, %v726
      %v728 = vpop.f32.mrb[0].mxu0
      %v729 = vpop.f32.mrb[0].mxu0
      %v730 = vadd.f32 0.0, %v729
      %v731 = vpop.f32.mrb[0].mxu0
      %732 = vmatprep.mubr.bf16.mxu0 %v547
      %733 = vmatmul.mubr.bf16.gmra.mrb[0].mxu0 %v546
      %v734 = vpop.f32.mrb[0].mxu0
      %v735 = vadd.f32 0.0, %v734
      %v736 = vpop.f32.mrb[0].mxu0
      %v737 = vpop.f32.mrb[0].mxu0
      %v738 = vadd.f32 0.0, %v737
      %v739 = vpop.f32.mrb[0].mxu0
      %740 = vdwg.mxu0
      %v741 = vld [vmem:[#allocation2] sm:$0x1]
      %v742 = vmax.f32 %v615, %v631
      %v743 = vmax.f32 %v618, %v634
      %v744 = vmax.f32 %v623, %v639
      %v745 = vmax.f32 %v626, %v642
      %v746 = vmax.f32 %v742, %v647
      %v747 = vmax.f32 %v743, %v650
      %v748 = vmax.f32 %v744, %v655
      %v749 = vmax.f32 %v745, %v658
      %v750 = vmax.f32 %v746, %v663
      %v751 = vmax.f32 %v747, %v666
      %v752 = vmax.f32 %v748, %v671
      %v753 = vmax.f32 %v749, %v674
      %v754 = vmax.f32 %v750, %v679
      %v755 = vmax.f32 %v751, %v682
      %v756 = vmax.f32 %v752, %v687
      %v757 = vmax.f32 %v753, %v690
      %v758 = vmax.f32 %v754, %v695
      %v759 = vmax.f32 %v755, %v698
      %v760 = vmax.f32 %v756, %v703
      %v761 = vmax.f32 %v757, %v706
      %v762 = vmax.f32 %v758, %v711
      %v763 = vmax.f32 %v759, %v714
      %v764 = vmax.f32 %v760, %v719
      %v765 = vmax.f32 %v761, %v722
      %v766 = vmax.f32 %v762, %v727
      %v767 = vmax.f32 %v763, %v730
      %v768 = vmax.f32 %v764, %v735
      %v769 = vmax.f32 %v765, %v738
      %v770 = vmax.f32 %v766, %v767
      %v771 = vmax.f32 %v768, %v769
      %v772 = vmax.f32 %v770, %v771
      %v773 = vrot.slane %v772, 4
      %v774 = vmax.f32 %v772, %v773
      %v775 = vrot.slane %v774, 2
      %v776 = vmax.f32 %v774, %v775
      %v777 = vrot.slane %v776, 1
      %v778 = vmax.f32 %v776, %v777
      %v779 = vmax.f32 %v741, %v778
      %v780 = vsub.f32 %v741, %v779
      %v781 = vmul.f32 %v780, 1.442695
      %v782 = vpow.pop %v781
      %v784 = vlaneseq
      %v785 = vshrl.u32 %v784, 7
      %v786 = vsub.s32 0, %v785
      %v787 = vrot.slane %v779, %v786
      %v789 = vsub.f32 %v615, %v787
      %v790 = vsub.f32 %v618, %v787
      %v791 = vsub.f32 %v623, %v787
      %v792 = vsub.f32 %v626, %v787
      %v793 = vsub.f32 %v631, %v787
      %v794 = vsub.f32 %v634, %v787
      %v795 = vsub.f32 %v639, %v787
      %v796 = vsub.f32 %v642, %v787
      %v797 = vsub.f32 %v647, %v787
      %v798 = vsub.f32 %v650, %v787
      %v799 = vsub.f32 %v655, %v787
      %v800 = vsub.f32 %v658, %v787
      %v801 = vsub.f32 %v663, %v787
      %v802 = vsub.f32 %v666, %v787
      %v803 = vsub.f32 %v671, %v787
      %v804 = vsub.f32 %v674, %v787
      %v805 = vsub.f32 %v679, %v787
      %v806 = vsub.f32 %v682, %v787
      %v807 = vsub.f32 %v687, %v787
      %v808 = vsub.f32 %v690, %v787
      %v809 = vsub.f32 %v695, %v787
      %v810 = vsub.f32 %v698, %v787
      %v811 = vsub.f32 %v703, %v787
      %v812 = vsub.f32 %v706, %v787
      %v813 = vsub.f32 %v711, %v787
      %v814 = vsub.f32 %v714, %v787
      %v815 = vsub.f32 %v719, %v787
      %v816 = vsub.f32 %v722, %v787
      %v817 = vsub.f32 %v727, %v787
      %v818 = vsub.f32 %v730, %v787
      %v819 = vsub.f32 %v735, %v787
      %v820 = vsub.f32 %v738, %v787
      %v821 = vmul.f32 %v789, 1.442695
      %v822 = vpow.pop %v821
      %v823 = vmul.f32 %v790, 1.442695
      %v824 = vpow.pop %v823
      %v825 = vmul.f32 %v791, 1.442695
      %v826 = vpow.pop %v825
      %v827 = vmul.f32 %v792, 1.442695
      %v828 = vpow.pop %v827
      %v829 = vmul.f32 %v793, 1.442695
      %v830 = vpow.pop %v829
      %v831 = vmul.f32 %v794, 1.442695
      %v832 = vpow.pop %v831
      %v833 = vmul.f32 %v795, 1.442695
      %v834 = vpow.pop %v833
      %v835 = vmul.f32 %v796, 1.442695
      %v836 = vpow.pop %v835
      %v837 = vmul.f32 %v797, 1.442695
      %v838 = vpow.pop %v837
      %v839 = vmul.f32 %v798, 1.442695
      %v840 = vpow.pop %v839
      %v841 = vmul.f32 %v799, 1.442695
      %v842 = vpow.pop %v841
      %v843 = vmul.f32 %v800, 1.442695
      %v844 = vpow.pop %v843
      %v845 = vmul.f32 %v801, 1.442695
      %v846 = vpow.pop %v845
      %v847 = vmul.f32 %v802, 1.442695
      %v848 = vpow.pop %v847
      %v849 = vmul.f32 %v803, 1.442695
      %v850 = vpow.pop %v849
      %v851 = vmul.f32 %v804, 1.442695
      %v852 = vpow.pop %v851
      %v853 = vmul.f32 %v805, 1.442695
      %v854 = vpow.pop %v853
      %v855 = vmul.f32 %v806, 1.442695
      %v856 = vpow.pop %v855
      %v857 = vmul.f32 %v807, 1.442695
      %v858 = vpow.pop %v857
      %v859 = vmul.f32 %v808, 1.442695
      %v860 = vpow.pop %v859
      %v861 = vmul.f32 %v809, 1.442695
      %v862 = vpow.pop %v861
      %v863 = vmul.f32 %v810, 1.442695
      %v864 = vpow.pop %v863
      %v865 = vmul.f32 %v811, 1.442695
      %v866 = vpow.pop %v865
      %v867 = vmul.f32 %v812, 1.442695
      %v868 = vpow.pop %v867
      %v869 = vmul.f32 %v813, 1.442695
      %v870 = vpow.pop %v869
      %v871 = vmul.f32 %v814, 1.442695
      %v872 = vpow.pop %v871
      %v873 = vmul.f32 %v815, 1.442695
      %v874 = vpow.pop %v873
      %v875 = vmul.f32 %v816, 1.442695
      %v876 = vpow.pop %v875
      %v877 = vmul.f32 %v817, 1.442695
      %v878 = vpow.pop %v877
      %v879 = vmul.f32 %v818, 1.442695
      %v880 = vpow.pop %v879
      %v881 = vmul.f32 %v819, 1.442695
      %v882 = vpow.pop %v881
      %v883 = vmul.f32 %v820, 1.442695
      %v884 = vpow.pop %v883
      %v885 = vld [vmem:[#allocation3] sm:$0xff]
      %v887 = vlaneseq
      %v888 = vshrl.u32 %v887, 7
      %v889 = vsub.s32 0, %v888
      %v890 = vrot.slane %v782, %v889
      %v892 = vmul.f32 %v890, %v885
      %v893 = vld [vmem:[%s260] sm:$0xff]
      %v894 = vpack.c.bf16 %v824, %v822
      %v895 = vpack.c.bf16 %v828, %v826
      %v896 = vpack.c.bf16 %v832, %v830
      %v897 = vpack.c.bf16 %v836, %v834
      %v898 = vpack.c.bf16 %v840, %v838
      %v899 = vpack.c.bf16 %v844, %v842
      %v900 = vpack.c.bf16 %v848, %v846
      %v901 = vpack.c.bf16 %v852, %v850
      %v902 = vpack.c.bf16 %v856, %v854
      %v903 = vpack.c.bf16 %v860, %v858
      %v904 = vpack.c.bf16 %v864, %v862
      %v905 = vpack.c.bf16 %v868, %v866
      %v906 = vpack.c.bf16 %v872, %v870
      %v907 = vpack.c.bf16 %v876, %v874
      %v908 = vpack.c.bf16 %v880, %v878
      %v909 = vpack.c.bf16 %v884, %v882
      %v911 = vunpack.c.l.b16 %v893
      %v912 = vunpack.c.h.b16 %v893
      %v913 = vpack.c.b16 %v911, %v911
      %v914 = vpack.c.b16 %v912, %v912
      %917 = vmatprep.subr.bf16.mxu0 0
      %918 = vmatpush1.bf16.msra.mxu0 %v894
      %919 = vmatprep.subr.bf16.mxu0 0
      %920 = vmatpush1.bf16.msra.mxu0 %v895
      %921 = vmatprep.subr.bf16.mxu0 0
      %922 = vmatpush1.bf16.msra.mxu0 %v896
      %923 = vmatprep.subr.bf16.mxu0 0
      %924 = vmatpush1.bf16.msra.mxu0 %v897
      %925 = vmatprep.subr.bf16.mxu0 0
      %926 = vmatpush1.bf16.msra.mxu0 %v898
      %927 = vmatprep.subr.bf16.mxu0 0
      %928 = vmatpush1.bf16.msra.mxu0 %v899
      %929 = vmatprep.subr.bf16.mxu0 0
      %930 = vmatpush1.bf16.msra.mxu0 %v900
      %931 = vmatprep.subr.bf16.mxu0 0
      %932 = vmatpush1.bf16.msra.mxu0 %v901
      %933 = vmatprep.subr.bf16.mxu0 0
      %934 = vmatpush1.bf16.msra.mxu0 %v902
      %935 = vmatprep.subr.bf16.mxu0 0
      %936 = vmatpush1.bf16.msra.mxu0 %v903
      %937 = vmatprep.subr.bf16.mxu0 0
      %938 = vmatpush1.bf16.msra.mxu0 %v904
      %939 = vmatprep.subr.bf16.mxu0 0
      %940 = vmatpush1.bf16.msra.mxu0 %v905
      %941 = vmatprep.subr.bf16.mxu0 0
      %942 = vmatpush1.bf16.msra.mxu0 %v906
      %943 = vmatprep.subr.bf16.mxu0 0
      %944 = vmatpush1.bf16.msra.mxu0 %v907
      %945 = vmatprep.subr.bf16.mxu0 0
      %946 = vmatpush1.bf16.msra.mxu0 %v908
      %947 = vmatprep.subr.bf16.mxu0 0
      %948 = vmatpush1.bf16.msra.mxu0 %v909
      %949 = vmatprep.mubr.bf16.mxu0 %v914
      %950 = vmatmul.mubr.bf16.gmra.mrb[0].mxu0 %v913
      %v951 = vpop.f32.mrb[0].mxu0
      %v952 = vadd.f32 0.0, %v951
      %v953 = vpop.f32.mrb[0].mxu0
      %v954 = vpop.f32.mrb[0].mxu0
      %v955 = vpop.f32.mrb[0].mxu0
      %956 = vdwg.mxu0
      %v957 = vadd.f32 %v892, %v952
      %958 = vst [vmem:[#allocation3] sm:$0xff] %v957
      %959 = vst [vmem:[#allocation2] sm:$0x1] %v779
      // Predicated region
      $region37: #{_lambda_.1} parent=31 // pred_check
        %p960 = pneg %p270
      $region38: #{_lambda_.1} parent=31 // pred_check_branch
        %962 = sbr.rel (%p960) target = $region40
      $region39: #{_lambda_.1} parent=31 // pred_region
        %v963 = vld [vmem:[#allocation3] sm:$0xff]
        %v964 = vrcp.pop %v963
        %v965 = vlaneseq
        %v966 = vshrl.u32 %v965, 7
        %v967 = vsub.s32 2, %v966
        %v968 = vrot.slane %v964, %v967
        %v969 = vmul.f32 %v963, %v968
        %970 = vst [vmem:[%s265] sm:$0x3] %v969
        %v971 = vld [vmem:[#allocation2] sm:$0x1]
        %v972 = vmul.f32 %v971, 0.01
        %973 = vst [vmem:[%s268] sm:$0x1] %v972
      $region40: #{_lambda_.1} parent=31 // pred_fallthru
        _
      %p974 = scmp.lt.s32.totalorder %s20, 1
      %s975 = scalar_select %p974, %s20, 1
      %s976 = smul.addr %s975, 2
      %s977 = scalar_lea.vmem %s3, %s976
      %p978 = scmp.lt.s32.totalorder %s20, 1
      %s979 = scalar_select %p978, %s20, 1
      %s980 = scalar_lea.vmem %s4, %s979
      // Predicated region
      $region41: #{_lambda_.1} parent=31 // pred_check
        %p981 = pneg %p124
      $region42: #{_lambda_.1} parent=31 // pred_check_branch
        %983 = sbr.rel (%p981) target = $region44
      $region43: #{_lambda_.1} parent=31 // pred_region
        _
      $region44: #{_lambda_.1} parent=31 // pred_fallthru
        _
      // Predicated region
      $region45: #{_lambda_.1} parent=31 // pred_check
        %p984 = pneg %p150
      $region46: #{_lambda_.1} parent=31 // pred_check_branch
        %986 = sbr.rel (%p984) target = $region48
      $region47: #{_lambda_.1} parent=31 // pred_region
        _
      $region48: #{_lambda_.1} parent=31 // pred_fallthru
        _
    $region32: #{_lambda_.1} parent=5 // pred_fallthru
      _
    %p987 = scmp.le.s32.totalorder 2, %s11
    // Predicated region
    $region49: #{_lambda_.1} parent=5 // pred_check
      %p988 = pneg %p987
    $region50: #{_lambda_.1} parent=5 // pred_check_branch
      %990 = sbr.rel (%p988) target = $region52
    $region51: #{_lambda_.1} parent=5 // pred_region
      %s991 = ssub.s32 %s11, 2
      // Predicated region
      $region53: #{_lambda_.1} parent=51 // pred_check
        %p992 = pneg %p130
      $region54: #{_lambda_.1} parent=51 // pred_check_branch
        %994 = sbr.rel (%p992) target = $region56
      $region55: #{_lambda_.1} parent=51 // pred_region
        %p995 = scmp.lt.s32.totalorder %s22, 1
        %s996 = scalar_select %p995, %s22, 1
        %s997 = smul.addr %s996, 2
        %s998 = scalar_lea.vmem %s3, %s997
      $region56: #{_lambda_.1} parent=51 // pred_fallthru
        _
      // Predicated region
      $region57: #{_lambda_.1} parent=51 // pred_check
        %p999 = pneg %p156
      $region58: #{_lambda_.1} parent=51 // pred_check_branch
        %1001 = sbr.rel (%p999) target = $region60
      $region59: #{_lambda_.1} parent=51 // pred_region
        %p1002 = scmp.lt.s32.totalorder %s22, 1
        %s1003 = scalar_select %p1002, %s22, 1
        %s1004 = scalar_lea.vmem %s4, %s1003
      $region60: #{_lambda_.1} parent=51 // pred_fallthru
        _
    $region52: #{_lambda_.1} parent=5 // pred_fallthru
      _
  $region6: #{_lambda_.1} parent=0 // loop_footer
    %s15 = sadd.s32 1, %s11
  $region7: #{_lambda_.1} parent=0 // loop_footer_branch
    %10 = sbr.rel target = $region3
  $region8: #{_lambda_.1} parent=0 // loop_exit
    _

</llo_original>
